<compile_context>
chip_gen: v7x
topology: tpu7x:2x2x1
jax: 0.10.0
libtpu: 0.0.40
codegen_flags: <defaults>
</compile_context>

<pallas_src>
import numpy as np
import jax
import jax.numpy as jnp
from jax.experimental import pallas as pl
from jax.experimental.pallas import tpu as pltpu

_MAX_CHUNKS = 8                                        # concurrent DMA chunks
_COL_CANDIDATES = (8192, 4096, 2048, 1024, 512, 256, 128)  # widest (lane-dense) first


def _sublane_multiple(dtype):
    # Native sublane packing: 8 for 4-byte, 16 for 2-byte, 32 for 1-byte dtypes.
    return max(8, 32 // jnp.dtype(dtype).itemsize)


def _plan_chunks(total, dtype):
    """Pick a (rows, cols) 2-D view (cols a multiple of 128) plus static
    row-chunk splits for concurrent DMAs.  Returns None for ragged totals."""
    cols = next((c for c in _COL_CANDIDATES if total % c == 0), None)
    if cols is None:
        return None
    rows = total // cols
    sub = _sublane_multiple(dtype)
    n_chunks = max(1, min(_MAX_CHUNKS, rows // sub))
    rows_per_chunk = -(-rows // n_chunks)              # ceil
    rows_per_chunk = -(-rows_per_chunk // sub) * sub   # sublane-aligned chunk starts
    splits, start = [], 0
    while start < rows:
        size = min(rows_per_chunk, rows - start)
        splits.append((int(start), int(size)))
        start += size
    return rows, cols, splits


def _pallas_hbm_copy(arr, splits):
    """Materialize `arr` via chunked HBM->HBM DMAs (no VMEM staging, no grid).

    splits: list of static (row_start, row_size) chunks for a 2-D `arr`, or
    None for a single whole-buffer DMA (used for ragged 1-D totals).
    """
    n_sems = len(splits) if splits is not None else 1
    nbytes = int(arr.size) * jnp.dtype(arr.dtype).itemsize

    def kernel(x_ref, o_ref, sems):
        if splits is None:
            copies = [pltpu.make_async_copy(x_ref, o_ref, sems.at[0])]
        else:
            copies = [
                pltpu.make_async_copy(x_ref.at[pl.ds(start, size)],
                                      o_ref.at[pl.ds(start, size)],
                                      sems.at[k])
                for k, (start, size) in enumerate(splits)
            ]
        for cp in copies:      # issue all -> DMA engines stream concurrently
            cp.start()
        for cp in copies:
            cp.wait()

    return pl.pallas_call(
        kernel,
        out_shape=jax.ShapeDtypeStruct(arr.shape, arr.dtype),
        in_specs=[pl.BlockSpec(memory_space=pl.ANY)],    # raw HBM ref, no auto-DMA
        out_specs=pl.BlockSpec(memory_space=pl.ANY),     # write straight to HBM
        scratch_shapes=[pltpu.SemaphoreType.DMA((n_sems,))],
        cost_estimate=pl.CostEstimate(flops=0, transcendentals=0,
                                      bytes_accessed=2 * nbytes),
    )(arr)


class ReshapeModule:
    """JAX/Pallas port of the PyTorch ReshapeModule.

    materialize=False (default): metadata-only reshape, no kernel launched
    (recommended — a contiguous C-order reshape is free).
    materialize=True: force a fresh HBM buffer.  Large inputs go through the
    chunked HBM->HBM DMA Pallas kernel; tiny inputs (< min_kernel_bytes) use a
    plain XLA copy since kernel launch cost would dominate.
    """

    def __init__(self, shape, materialize=False, min_kernel_bytes=1 << 20):
        self.shape = tuple(int(s) for s in shape)
        self.materialize = bool(materialize)
        self.min_kernel_bytes = int(min_kernel_bytes)

    def __call__(self, x):
        assert int(np.prod(x.shape[1:])) == int(np.prod(self.shape)), (
            f"cannot reshape trailing dims {x.shape[1:]} into {self.shape}"
        )
        b = x.shape[0]
        out_shape = (b,) + self.shape

        if not self.materialize:
            # Fast path: contiguous reshape is metadata-only in XLA.
            return x.reshape(out_shape)

        total = int(np.prod(x.shape))
        itemsize = jnp.dtype(x.dtype).itemsize
        if total == 0 or total * itemsize < self.min_kernel_bytes:
            # Small-size bypass: plain XLA copy is strictly cheaper than a launch.
            return jnp.copy(x).reshape(out_shape)

        plan = _plan_chunks(total, x.dtype)
        if plan is None:
            # Ragged total: single unaligned whole-buffer HBM->HBM DMA
            # (still materializes a fresh buffer, no silent metadata fallback).
            flat = x.reshape(total)                    # metadata-only glue
            return _pallas_hbm_copy(flat, None).reshape(out_shape)

        rows, cols, splits = plan
        x2d = x.reshape(rows, cols)                    # metadata-only glue
        out2d = _pallas_hbm_copy(x2d, splits)          # chunked HBM->HBM DMA copy
        return out2d.reshape(out_shape)                # metadata-only glue


if __name__ == "__main__":
    key = jax.random.PRNGKey(0)
    keys = jax.random.split(key, 4)

    checks = [
        # (input shape,    target trailing shape, dtype)
        ((2, 4, 16, 16),   (16, 64),  jnp.float32),   # single-chunk DMA
        ((2, 4, 16, 16),   (4, 256),  jnp.bfloat16),  # bf16 path
        ((8, 8, 64, 64),   (8, 4096), jnp.float32),   # 8-way chunked DMA (2 MiB)
        ((2, 3, 5, 7),     (105,),    jnp.float32),   # ragged -> whole-buffer DMA
    ]

    for k, (in_shape, trg, dtype) in zip(keys, checks):
        x = jax.random.normal(k, in_shape, dtype=jnp.float32).astype(dtype)
        expected = x.reshape(-1, *trg)
        out_shape = (in_shape[0],) + tuple(trg)

        # Recommended zero-copy path (no kernel launched).
        y_fast = ReshapeModule(trg)(x)
        # Materialized path with default threshold (small inputs -> XLA copy).
        y_mat = ReshapeModule(trg, materialize=True)(x)
        # Force the Pallas HBM->HBM DMA kernel even at test-sized inputs.
        y_dma = ReshapeModule(trg, materialize=True, min_kernel_bytes=0)(x)
        y_dma = jax.block_until_ready(y_dma)

        for y in (y_fast, y_mat, y_dma):
            assert y.shape == out_shape, (y.shape, out_shape)
            assert y.dtype == x.dtype, (y.dtype, x.dtype)
            np.testing.assert_array_equal(
                np.asarray(y.astype(jnp.float32)),
                np.asarray(expected.astype(jnp.float32)))

    print("KERNEL_OK")
</pallas_src>

<mosaic_0001>
module attributes {stable_mosaic.version = 11 : i64} {
  func.func @kernel(%arg0: memref<1x2048xf32, #tpu.memory_space<any>>, %arg1: memref<1x2048xf32, #tpu.memory_space<any>>, %arg2: memref<1x!tpu.dma_semaphore, #tpu.memory_space<semaphore_mem>>) attributes {dimension_semantics = [], scalar_prefetch = 0 : i64, scratch_operands = 1 : i64, tpu.core_type = #tpu.core_type<tc>} {
    %c0_i32 = arith.constant 0 : i32
    %c0_i32_0 = arith.constant 0 : i32
    %c0_i32_1 = arith.constant 0 : i32
    %0 = tpu.memref_slice %arg0[%c0_i32_0, %c0_i32_1] : memref<1x2048xf32, #tpu.memory_space<any>> -> memref<1x2048xf32, #tpu.memory_space<any>>
    %c0_i32_2 = arith.constant 0 : i32
    %c0_i32_3 = arith.constant 0 : i32
    %1 = tpu.memref_slice %arg1[%c0_i32_2, %c0_i32_3] : memref<1x2048xf32, #tpu.memory_space<any>> -> memref<1x2048xf32, #tpu.memory_space<any>>
    %2 = tpu.memref_slice %arg2[%c0_i32] : memref<1x!tpu.dma_semaphore, #tpu.memory_space<semaphore_mem>> -> memref<1x!tpu.dma_semaphore, #tpu.memory_space<semaphore_mem>>
    %3 = tpu.memref_squeeze %2 : memref<1x!tpu.dma_semaphore, #tpu.memory_space<semaphore_mem>> -> memref<!tpu.dma_semaphore, #tpu.memory_space<semaphore_mem>>
    tpu.enqueue_dma source(%0 : memref<1x2048xf32, #tpu.memory_space<any>>) target(%1 : memref<1x2048xf32, #tpu.memory_space<any>>) target_semaphore(%3 : memref<!tpu.dma_semaphore, #tpu.memory_space<semaphore_mem>>)
    %c0_i32_4 = arith.constant 0 : i32
    %c0_i32_5 = arith.constant 0 : i32
    %c0_i32_6 = arith.constant 0 : i32
    %4 = tpu.memref_slice %arg0[%c0_i32_5, %c0_i32_6] : memref<1x2048xf32, #tpu.memory_space<any>> -> memref<1x2048xf32, #tpu.memory_space<any>>
    %c0_i32_7 = arith.constant 0 : i32
    %c0_i32_8 = arith.constant 0 : i32
    %5 = tpu.memref_slice %arg1[%c0_i32_7, %c0_i32_8] : memref<1x2048xf32, #tpu.memory_space<any>> -> memref<1x2048xf32, #tpu.memory_space<any>>
    %6 = tpu.memref_slice %arg2[%c0_i32_4] : memref<1x!tpu.dma_semaphore, #tpu.memory_space<semaphore_mem>> -> memref<1x!tpu.dma_semaphore, #tpu.memory_space<semaphore_mem>>
    %7 = tpu.memref_squeeze %6 : memref<1x!tpu.dma_semaphore, #tpu.memory_space<semaphore_mem>> -> memref<!tpu.dma_semaphore, #tpu.memory_space<semaphore_mem>>
    tpu.wait_dma2 semaphore(%7 : memref<!tpu.dma_semaphore, #tpu.memory_space<semaphore_mem>>) src(%4 : memref<1x2048xf32, #tpu.memory_space<any>>) dst(%5 : memref<1x2048xf32, #tpu.memory_space<any>>)
    return
  }
}

</mosaic_0001>

<llo_original>
// kernel: tpu_custom_call.1
$region0: #{tpu_custom_call.1}
  #allocation0 [shape = 'u32[]', space=smem, size = 0x4, offset = 0x4, fixed_abs, tag = 'smem constant byte address 0x4 - core index']
  #allocation1 [shape = 'u32[144,128]{1,0:T(1,128)}', space=vmem, size = 0x12000, scoped, tag = 'internal scratch']
  #allocation2 [shape = 's32[1]{0}', space=sflag, size = 0x4, scoped, tag = 'scratch operand']
  #allocation3 [shape = 's32[]', space=sflag, size = 0x4, offset = 0, fixed_abs, tag = 'sflag constant byte address 0x0 - dummy sync flag']
  #allocation4 [shape = 'u32[0]{0}', space=smem, size = 0, offset = 0, fixed_abs, tag = 'smem constant byte address 0x0 - null']
  %s0 = inlined_call_operand.hbm [shape: f32[1,2048], index: 0, kind: input, shape index: {}]
  %s1 = inlined_call_operand.hbm [shape: f32[1,2048], index: 1, kind: output, shape index: {}]
  %s2 = sld [smem:[#allocation0]]
  $region2: #{tpu_custom_call.1} parent=0
    _
  %s4 = ssub.s32 1, %s2
  %s5 = scalar_select 0, %s4, %s2
  %s7 = sshll.u32 1, 14
  %s8 = sxor.u32 4294967295, %s7
  %s11 = sshll.u32 3, 24
  %s12 = sxor.u32 4294967295, %s11
  %s13 = sand.u32 0, %s12
  %s15 = sor.u32 %s13, 0
  %18 = dma.general %s0, 256, %s1, [#allocation2], [#allocation3], [#allocation4], %s15, 0
  %s19 = smul.u32 1, 16
  %s20 = sshll.u32 %s19, 4
  %21 = dma.done [#allocation2], %s20
  %22 = vsyncmov [#allocation2]
  %s23 = vpop.sfrf %22
  %p24 = scmp.eq.s32.totalorder %s23, 0
  %p25 = pneg %p24
  %27 = shalt.err (%p25)

</llo_original>
